<compile_context>
chip_gen: v5e
topology: v5e:2x2
jax: 0.10.0
libtpu: 0.0.40
codegen_flags: <defaults>
</compile_context>

<pallas_src>
import math

import jax
import jax.numpy as jnp
from jax.experimental import pallas as pl
from jax.experimental.pallas import tpu as pltpu


def _compute_specularities_kernel(spec_ref, lt_ref, out_ref):
    # spec_ref: (TB, TN)    f32 -- flattened specular-shading tile
    # lt_ref:   (TB, 3)     f32 -- per-image RGB light colour
    # out_ref:  (TB, 3, TN) f32 -- tinted specular SPD tile
    s = spec_ref[...]                                   # (TB, TN)
    for c in range(3):                                  # static unroll over R, G, B
        # (TB, 1) per-row scale, lane-broadcast against the (TB, TN) tile.
        out_ref[:, c, :] = s * lt_ref[:, c:c + 1]


def compute_specularities(spec, l_t, *, tile_b=8, tile_n=16384):
    """Pallas implementation of computeSpecularities.forward(spec, l_t).

    spec : (B, C, *spatial) float32  (bioFace uses C == 1)
    l_t  : (B, 3)           float32  per-image light colour
    returns (B, 3*C, *spatial) float32, matching torch.cat(..., dim=1).
    """
    spec = jnp.asarray(spec, jnp.float32)
    l_t = jnp.asarray(l_t, jnp.float32)
    if l_t.ndim != 2 or l_t.shape[1] != 3:
        raise ValueError(f"l_t must have shape (B, 3), got {l_t.shape}")
    if spec.ndim < 2 or spec.shape[0] != l_t.shape[0]:
        raise ValueError(f"spec must be (B, C, ...) with matching batch, got {spec.shape}")

    B = spec.shape[0]
    rest = spec.shape[1:]
    N = math.prod(rest)
    spec2 = spec.reshape(B, N)

    # Block shapes obey the (8, 128) rule: either a multiple (8 / 16384) or the
    # full array extent (small B / small N demo case).
    tb = B if B <= tile_b else tile_b
    tn = N if N <= tile_n else tile_n
    grid = (pl.cdiv(B, tb), pl.cdiv(N, tn))

    cost = pl.CostEstimate(
        flops=3 * B * N,                                   # one multiply per output elem
        transcendentals=0,
        bytes_accessed=4 * (B * N + 3 * B + 3 * B * N),    # read spec + l_t, write out
    )

    out_flat = pl.pallas_call(
        _compute_specularities_kernel,
        out_shape=jax.ShapeDtypeStruct((B, 3, N), jnp.float32),
        grid=grid,
        in_specs=[
            pl.BlockSpec((tb, tn), lambda i, j: (i, j)),   # spec tile
            pl.BlockSpec((tb, 3), lambda i, j: (i, 0)),    # light colour (tiny, B-tiled)
        ],
        out_specs=pl.BlockSpec((tb, 3, tn), lambda i, j: (i, 0, j)),
        compiler_params=pltpu.CompilerParams(
            dimension_semantics=("parallel", "parallel"),
            vmem_limit_bytes=32 * 1024 * 1024,
        ),
        cost_estimate=cost,
    )(spec2, l_t)

    # (B, 3, N) -> (B, 3*C, *spatial) is a contiguous (zero-copy) reshape and
    # reproduces torch.cat((r, g, b), dim=1) exactly.
    return out_flat.reshape((B, 3 * rest[0]) + tuple(rest[1:]))


def _compute_specularities_ref(spec, l_t):
    # Pure-JAX reference mirroring the PyTorch module: each l_t channel scales
    # its batch element of spec; results concatenated along dim 1.
    bshape = (-1,) + (1,) * (spec.ndim - 1)
    r = spec * l_t[:, 0].reshape(bshape)
    g = spec * l_t[:, 1].reshape(bshape)
    b = spec * l_t[:, 2].reshape(bshape)
    return jnp.concatenate((r, g, b), axis=1)


if __name__ == "__main__":
    key = jax.random.PRNGKey(0)
    k_spec, k_lt = jax.random.split(key)

    B, H, W = 2, 16, 16                       # small bioFace-style batch
    spec = jax.random.uniform(k_spec, (B, 1, H, W), dtype=jnp.float32)
    l_t = jax.random.uniform(k_lt, (B, 3), dtype=jnp.float32)

    out = compute_specularities(spec, l_t)
    out = jax.block_until_ready(out)

    ref = _compute_specularities_ref(spec, l_t)
    assert out.shape == (B, 3, H, W), out.shape
    assert jnp.allclose(out, ref, atol=1e-6, rtol=1e-6)

    print("KERNEL_OK")
</pallas_src>

<mosaic_0001>
module attributes {stable_mosaic.version = 11 : i64} {
  func.func @_compute_specularities_kernel(%arg0: i32, %arg1: i32, %arg2: memref<2x256xf32, #tpu.memory_space<vmem>>, %arg3: memref<2x3xf32, #tpu.memory_space<vmem>>, %arg4: memref<2x3x256xf32, #tpu.memory_space<vmem>>) attributes {dimension_semantics = [#tpu.dimension_semantics<parallel>, #tpu.dimension_semantics<parallel>], iteration_bounds = array<i64: 1, 1>, scalar_prefetch = 0 : i64, scratch_operands = 0 : i64, tpu.core_type = #tpu.core_type<tc>, window_params = [{transform_indices = @transform_0, window_bounds = array<i64: 2, 256>}, {transform_indices = @transform_1, window_bounds = array<i64: 2, 3>}, {transform_indices = @transform_2, window_bounds = array<i64: 2, 3, 256>}]} {
    %c0 = arith.constant 0 : index
    %c0_0 = arith.constant 0 : index
    %0 = vector.load %arg2[%c0, %c0_0] : memref<2x256xf32, #tpu.memory_space<vmem>>, vector<2x256xf32>
    %c0_1 = arith.constant 0 : index
    %c0_2 = arith.constant 0 : index
    %1 = vector.load %arg3[%c0_1, %c0_2] : memref<2x3xf32, #tpu.memory_space<vmem>>, vector<2x1xf32>
    %2 = vector.broadcast %1 : vector<2x1xf32> to vector<2x256xf32>
    %3 = arith.mulf %0, %2 : vector<2x256xf32>
    %c0_3 = arith.constant 0 : index
    %c0_4 = arith.constant 0 : index
    %c0_5 = arith.constant 0 : index
    %4 = vector.load %arg4[%c0_3, %c0_4, %c0_5] : memref<2x3x256xf32, #tpu.memory_space<vmem>>, vector<2x1x256xf32>
    %5 = vector.shape_cast %4 : vector<2x1x256xf32> to vector<2x256xf32>
    %6 = vector.shape_cast %3 : vector<2x256xf32> to vector<2x1x256xf32>
    tpu.vector_store %arg4[%c0_3, %c0_4, %c0_5], %6 {strides = array<i32>} : memref<2x3x256xf32, #tpu.memory_space<vmem>>, vector<2x1x256xf32>,
    %c0_6 = arith.constant 0 : index
    %c1 = arith.constant 1 : index
    %7 = vector.load %arg3[%c0_6, %c1] : memref<2x3xf32, #tpu.memory_space<vmem>>, vector<2x1xf32>
    %8 = vector.broadcast %7 : vector<2x1xf32> to vector<2x256xf32>
    %9 = arith.mulf %0, %8 : vector<2x256xf32>
    %c0_7 = arith.constant 0 : index
    %c1_8 = arith.constant 1 : index
    %c0_9 = arith.constant 0 : index
    %10 = vector.load %arg4[%c0_7, %c1_8, %c0_9] : memref<2x3x256xf32, #tpu.memory_space<vmem>>, vector<2x1x256xf32>
    %11 = vector.shape_cast %10 : vector<2x1x256xf32> to vector<2x256xf32>
    %12 = vector.shape_cast %9 : vector<2x256xf32> to vector<2x1x256xf32>
    tpu.vector_store %arg4[%c0_7, %c1_8, %c0_9], %12 {strides = array<i32>} : memref<2x3x256xf32, #tpu.memory_space<vmem>>, vector<2x1x256xf32>,
    %c0_10 = arith.constant 0 : index
    %c2 = arith.constant 2 : index
    %13 = vector.load %arg3[%c0_10, %c2] : memref<2x3xf32, #tpu.memory_space<vmem>>, vector<2x1xf32>
    %14 = vector.broadcast %13 : vector<2x1xf32> to vector<2x256xf32>
    %15 = arith.mulf %0, %14 : vector<2x256xf32>
    %c0_11 = arith.constant 0 : index
    %c2_12 = arith.constant 2 : index
    %c0_13 = arith.constant 0 : index
    %16 = vector.load %arg4[%c0_11, %c2_12, %c0_13] : memref<2x3x256xf32, #tpu.memory_space<vmem>>, vector<2x1x256xf32>
    %17 = vector.shape_cast %16 : vector<2x1x256xf32> to vector<2x256xf32>
    %18 = vector.shape_cast %15 : vector<2x256xf32> to vector<2x1x256xf32>
    tpu.vector_store %arg4[%c0_11, %c2_12, %c0_13], %18 {strides = array<i32>} : memref<2x3x256xf32, #tpu.memory_space<vmem>>, vector<2x1x256xf32>,
    return
  }
  func.func @transform_0(%arg0: i32, %arg1: i32) -> (i32, i32) {
    %c0_i32 = arith.constant 0 : i32
    return %arg0, %arg1 : i32, i32
  }
  func.func @transform_1(%arg0: i32, %arg1: i32) -> (i32, i32) {
    %c0_i32 = arith.constant 0 : i32
    %c0_i32_0 = arith.constant 0 : i32
    return %arg0, %c0_i32 : i32, i32
  }
  func.func @transform_2(%arg0: i32, %arg1: i32) -> (i32, i32, i32) {
    %c0_i32 = arith.constant 0 : i32
    %c0_i32_0 = arith.constant 0 : i32
    return %arg0, %c0_i32, %arg1 : i32, i32, i32
  }
}

</mosaic_0001>

<llo_original>
// kernel: tpu_custom_call.1
$region0: #{tpu_custom_call.1}
  #allocation0 [shape = 'u32[]', space=smem, size = 0x4, offset = 0x4, fixed_abs, tag = 'smem constant byte address 0x4 - core index']
  #allocation1 [shape = 'u32[72,128]{1,0:T(1,128)}', space=vmem, size = 0x9000, scoped, tag = 'internal scratch']
  %s0 = inlined_call_operand.hbm [shape: f32[2,256], index: 0, kind: input, shape index: {}]
  %s1 = inlined_call_operand.hbm [shape: f32[2,3], index: 1, kind: input, shape index: {}]
  %s2 = inlined_call_operand.vmem [shape: f32[2,3,256], index: 2, kind: output, shape index: {}]
  %s3 = sld [smem:[#allocation0]]
  $region26: #{tpu_custom_call.1} parent=0
    _
  %s5 = ssub.s32 1, %s3
  %s6 = scalar_select 0, %s5, %s3
  $region1: #{tpu_custom_call.1} parent=0
    #allocation2 [shape = 'u8[2048]{0}', space=vmem, size = 0x800, scoped, tag = 'input window, operand 0, single buffered']
    #allocation3 [shape = 's32[1]{0}', space=sflag, size = 0x4, scoped, tag = 'scoped memory for tpu_custom_call.1']
    #allocation4 [shape = 'u8[1024]{0}', space=vmem, size = 0x400, scoped, tag = 'input window, operand 1, single buffered']
    #allocation5 [shape = 's32[1]{0}', space=sflag, size = 0x4, scoped, tag = 'scoped memory for tpu_custom_call.1']
    %7 = vsyncpa [#allocation3], 0
    %8 = vsyncpa [#allocation5], 0
    // Predicated region
    $region2: #{tpu_custom_call.1} parent=1 // pred_check
      _
    $region3: #{tpu_custom_call.1} parent=1 // pred_check_branch
      %10 = sbr.rel (0) target = $region5
    $region4: #{tpu_custom_call.1} parent=1 // pred_region
      %12 = vsyncadd [#allocation3], 0
      %s14 = sshll.u32 %s0, 4
      %s15 = int_to_ptr.hbm [resolvable:$true] %s14
      %s16 = sshll.u32 [#allocation2], 4
      %s17 = int_to_ptr.vmem [resolvable:$true] %s16
      %19 = dma.hbm_to_vmem [thread:$0]  %s15, 64, %s17, [#allocation3]
    $region5: #{tpu_custom_call.1} parent=1 // pred_fallthru
      _
    // Predicated region
    $region6: #{tpu_custom_call.1} parent=1 // pred_check
      _
    $region7: #{tpu_custom_call.1} parent=1 // pred_check_branch
      %21 = sbr.rel (0) target = $region9
    $region8: #{tpu_custom_call.1} parent=1 // pred_region
      %23 = vsyncadd [#allocation5], 0
      %s25 = sshll.u32 %s1, 4
      %s26 = int_to_ptr.hbm [resolvable:$true] %s25
      %s27 = sshll.u32 [#allocation4], 4
      %s28 = int_to_ptr.vmem [resolvable:$true] %s27
      %30 = dma.hbm_to_vmem [thread:$0]  %s26, 32, %s28, [#allocation5]
    $region9: #{tpu_custom_call.1} parent=1 // pred_fallthru
      _
    // Predicated region
    $region10: #{tpu_custom_call.1} parent=1 // pred_check
      _
    $region11: #{tpu_custom_call.1} parent=1 // pred_check_branch
      %32 = sbr.rel (0) target = $region13
    $region12: #{tpu_custom_call.1} parent=1 // pred_region
      %34 = dma.done [#allocation3], 64
    $region13: #{tpu_custom_call.1} parent=1 // pred_fallthru
      _
    // Predicated region
    $region14: #{tpu_custom_call.1} parent=1 // pred_check
      _
    $region15: #{tpu_custom_call.1} parent=1 // pred_check_branch
      %36 = sbr.rel (0) target = $region17
    $region16: #{tpu_custom_call.1} parent=1 // pred_region
      %38 = dma.done [#allocation5], 32
    $region17: #{tpu_custom_call.1} parent=1 // pred_fallthru
      _
    %v39 = vld [vmem:[#allocation2] sm:$0xf]
    %v40 = vld [vmem:[#allocation4] sm:$0x3]
    %42 = vset.pattern.permute.xlu0 0
    %43 = vperm.xlu0 %42, %v40
    %v44 = vpop.permute.xlu0 %43
    %v46 = vunpack.c.l.s4 269488144
    %v47 = vunpack.c.0.s8 %v46
    %v48 = vperm.slane %v44, %v47
    %v50 = vmul.f32 %v39, %v48
    %v52 = vrot.slane %v50, 1
    %v53 = vrot.slane %v50, 2
    %v54 = vrot.slane %v50, 3
    %vm55 = vcmask 1040384
    %v56 = vsel %vm55, %v50, %v52
    %vm57 = vcmask 1042434
    %v58 = vsel %vm57, %v53, %v54
    %vm59 = vcmask 1041408
    %v60 = vsel %vm59, %v56, %v58
    %vm61 = vcmask 1041409
    %v62 = vsel %vm61, %v50, %v52
    %vm63 = vcmask 1043459
    %v64 = vsel %vm63, %v53, %v54
    %vm65 = vcmask 1042433
    %v66 = vsel %vm65, %v62, %v64
    %v67 = vrot.slane %v66, 1
    %v70 = vlaneseq
    %vm71 = vcmp.ge.s32.totalorder %v70, 0
    %vm72 = vcmp.lt.s32.totalorder %v70, 256
    %vm73 = vmand %vm71, %vm72
    %74 = vst.msk [vmem:[%s2] ss:$4 sm:$0x3] %vm73, %v60
    %s75 = scalar_lea.vmem %s2, 8
    %76 = vst.msk [vmem:[%s75] ss:$4 sm:$0x3] %vm73, %v67
    %v77 = vld [vmem:[#allocation4] sm:$0x3]
    %79 = vset.pattern.permute.xlu0 1
    %80 = vperm.xlu0 %79, %v77
    %v81 = vpop.permute.xlu0 %80
    %v83 = vunpack.c.l.s4 269488144
    %v84 = vunpack.c.0.s8 %v83
    %v85 = vperm.slane %v81, %v84
    %v87 = vmul.f32 %v39, %v85
    %v89 = vrot.slane %v87, 1
    %v90 = vrot.slane %v87, 2
    %v91 = vrot.slane %v87, 3
    %v92 = vsel %vm55, %v87, %v89
    %v93 = vsel %vm57, %v90, %v91
    %v94 = vsel %vm59, %v92, %v93
    %v95 = vsel %vm61, %v87, %v89
    %v96 = vsel %vm63, %v90, %v91
    %v97 = vsel %vm65, %v95, %v96
    %v98 = vrot.slane %v97, 1
    %s101 = scalar_lea.vmem %s2, 1
    %102 = vst.msk [vmem:[%s101] ss:$4 sm:$0x3] %vm73, %v94
    %s103 = scalar_lea.vmem %s2, 9
    %104 = vst.msk [vmem:[%s103] ss:$4 sm:$0x3] %vm73, %v98
    %v105 = vld [vmem:[#allocation4] sm:$0x3]
    %107 = vset.pattern.permute.xlu0 2
    %108 = vperm.xlu0 %107, %v105
    %v109 = vpop.permute.xlu0 %108
    %v111 = vunpack.c.l.s4 269488144
    %v112 = vunpack.c.0.s8 %v111
    %v113 = vperm.slane %v109, %v112
    %v115 = vmul.f32 %v39, %v113
    %v117 = vrot.slane %v115, 1
    %v118 = vrot.slane %v115, 2
    %v119 = vrot.slane %v115, 3
    %v120 = vsel %vm55, %v115, %v117
    %v121 = vsel %vm57, %v118, %v119
    %v122 = vsel %vm59, %v120, %v121
    %v123 = vsel %vm61, %v115, %v117
    %v124 = vsel %vm63, %v118, %v119
    %v125 = vsel %vm65, %v123, %v124
    %v126 = vrot.slane %v125, 1
    %s129 = scalar_lea.vmem %s2, 2
    %130 = vst.msk [vmem:[%s129] ss:$4 sm:$0x3] %vm73, %v122
    %s131 = scalar_lea.vmem %s2, 10
    %132 = vst.msk [vmem:[%s131] ss:$4 sm:$0x3] %vm73, %v126
    // Predicated region
    $region18: #{tpu_custom_call.1} parent=1 // pred_check
      _
    $region19: #{tpu_custom_call.1} parent=1 // pred_check_branch
      %134 = sbr.rel (0) target = $region21
    $region20: #{tpu_custom_call.1} parent=1 // pred_region
      _
    $region21: #{tpu_custom_call.1} parent=1 // pred_fallthru
      _
    // Predicated region
    $region22: #{tpu_custom_call.1} parent=1 // pred_check
      _
    $region23: #{tpu_custom_call.1} parent=1 // pred_check_branch
      %136 = sbr.rel (0) target = $region25
    $region24: #{tpu_custom_call.1} parent=1 // pred_region
      _
    $region25: #{tpu_custom_call.1} parent=1 // pred_fallthru
      _
    %137 = vsyncpa [#allocation3], 1
    %138 = vsyncpa [#allocation5], 1

</llo_original>
